<compile_context>
chip_gen: v5e
topology: v5e:2x2
jax: 0.10.0
libtpu: 0.0.40
codegen_flags: <defaults>
</compile_context>

<pallas_src>
import functools

import jax
import jax.numpy as jnp
from jax.experimental import pallas as pl
from jax.experimental.pallas import tpu as pltpu


def _round_up(x, m):
    return -(-x // m) * m


def _initial_model_kernel(
    x_ref,    # [TB, OBS]       activations (f32)
    w1_ref,   # [OBS, HID]      representation layer-1 weight (param_dtype)
    b1_ref,   # [1, HID]        layer-1 bias (f32)
    wc_ref,   # [HID, OUT_PAD]  fused weight: [w2 | w2@wp | w2@wv | 0-pad]
    bc_ref,   # [1, OUT_PAD]    fused bias:   [b2 | b2@wp+bp | b2@wv+bv | 0]
    out_ref,  # out [TB, OUT_PAD]  lane-dense combined hr/policy/value slab
):
    # stage 1: representation first layer + ReLU (f32 accumulation on the MXU)
    x = x_ref[...].astype(w1_ref.dtype)
    h = jnp.dot(x, w1_ref[...], preferred_element_type=jnp.float32) + b1_ref[...]
    h = jnp.maximum(h, 0.0)

    # stage 2: one fused matmul producing [hr | policy | value | zero-pad], then a single
    # unmasked 128-lane-multiple store (no masked partial stores anywhere).
    out = (
        jnp.dot(h.astype(wc_ref.dtype), wc_ref[...], preferred_element_type=jnp.float32)
        + bc_ref[...]
    )
    out_ref[...] = out.astype(out_ref.dtype)


def prepare_params(params, *, param_dtype=jnp.float32):
    """One-time packing of raw (w1,b1,w2,b2,wv,bv,wp,bp) into the fused kernel layout.

    Call this once (outside the training/inference step); the returned dict is what
    `initial_model_forward` consumes, so the per-step work is only the pallas_call.
    """
    w1, b1, w2, b2, wv, bv, wp, bp = params
    obs, hid = w1.shape
    act = wp.shape[1]
    out_pad = _round_up(hid + act + 1, 128)  # lane-dense combined output width

    w1f = w1.astype(jnp.float32)
    b1f = b1.astype(jnp.float32).reshape(1, hid)
    w2f = w2.astype(jnp.float32)
    b2f = b2.astype(jnp.float32).reshape(1, hid)
    wvf = wv.astype(jnp.float32)
    bvf = bv.astype(jnp.float32).reshape(1, 1)
    wpf = wp.astype(jnp.float32)
    bpf = bp.astype(jnp.float32).reshape(1, act)

    # Fold the head matmuls into the second representation matmul:
    #   hr     = h @ w2 + b2                      -> cols [0:hid] use w2/b2 verbatim
    #   policy = hr @ wp + bp = h @ (w2@wp) + (b2@wp + bp)
    #   value  = hr @ wv + bv = h @ (w2@wv) + (b2@wv + bv)
    wc = (
        jnp.zeros((hid, out_pad), jnp.float32)
        .at[:, :hid].set(w2f)
        .at[:, hid:hid + act].set(w2f @ wpf)
        .at[:, hid + act].set((w2f @ wvf)[:, 0])
    )
    bc = (
        jnp.zeros((1, out_pad), jnp.float32)
        .at[:, :hid].set(b2f)
        .at[:, hid:hid + act].set(b2f @ wpf + bpf)
        .at[:, hid + act].set((b2f @ wvf + bvf)[0, 0])
    )

    return {
        "w1": w1f.astype(param_dtype),
        "b1": b1f,                       # biases stay f32 (added post-accumulation)
        "wc": wc.astype(param_dtype),
        "bc": bc,
        "obs": obs,
        "hid": hid,
        "act": act,
        "out_pad": out_pad,
    }


def initial_model_forward(x, packed, *, tile_b=None, out_dtype=jnp.float32):
    """Fused representation + value + policy forward.

    x: [B, obs_dim] float32; packed: output of prepare_params().
    Returns (hidden_representation [B, hid], value [B], policy_logits [B, act]).
    """
    w1c, b1c, wc, bc = packed["w1"], packed["b1"], packed["wc"], packed["bc"]
    obs, hid, act, out_pad = packed["obs"], packed["hid"], packed["act"], packed["out_pad"]
    B, obs_x = x.shape
    assert obs_x == obs

    # ---- batch tiling: one tile (grid=(1,)) whenever the padded batch fits; only
    # genuinely large batches split (and can then shard across v7x's two TCs). ----
    if tile_b is None:
        tile_b = min(_round_up(B, 8), 1024)
    tile_b = max(8, (tile_b // 8) * 8)
    B_pad = _round_up(B, tile_b)
    xp = x if B_pad == B else jnp.pad(x, ((0, B_pad - B), (0, 0)))
    grid = (B_pad // tile_b,)

    wrepl = lambda i: (0, 0)  # weights/biases replicated across the batch grid axis
    in_specs = [
        pl.BlockSpec((tile_b, obs), lambda i: (i, 0)),  # x
        pl.BlockSpec((obs, hid), wrepl),                # w1
        pl.BlockSpec((1, hid), wrepl),                  # b1
        pl.BlockSpec((hid, out_pad), wrepl),            # fused hr+policy+value weight
        pl.BlockSpec((1, out_pad), wrepl),              # fused bias
    ]
    out_specs = pl.BlockSpec((tile_b, out_pad), lambda i: (i, 0))
    out_shape = jax.ShapeDtypeStruct((B_pad, out_pad), out_dtype)

    # ---- VMEM budget from the actual resident blocks (x/out double-buffered by the
    # pipeline; weights counted double-buffered too for headroom), capped for v7x. ----
    w_item = jnp.dtype(w1c.dtype).itemsize
    o_item = jnp.dtype(out_dtype).itemsize
    x_tile_bytes = tile_b * obs * 4
    out_tile_bytes = tile_b * out_pad * o_item
    param_bytes = (w1c.size * w_item + b1c.size * 4 + wc.size * w_item + bc.size * 4)
    vmem_limit = int(
        min(64 << 20,
            max(2 * (x_tile_bytes + out_tile_bytes) + 2 * param_bytes + (2 << 20),
                16 << 20))
    )

    flops = 2 * B_pad * (obs * hid + hid * out_pad)
    bytes_accessed = int(B_pad * obs * 4 + param_bytes + B_pad * out_pad * o_item)

    out_full = pl.pallas_call(
        _initial_model_kernel,
        grid=grid,
        in_specs=in_specs,
        out_specs=out_specs,
        out_shape=out_shape,
        compiler_params=pltpu.CompilerParams(
            dimension_semantics=("parallel",),
            vmem_limit_bytes=vmem_limit,
        ),
        cost_estimate=pl.CostEstimate(
            flops=flops, transcendentals=0, bytes_accessed=bytes_accessed
        ),
    )(xp, w1c, b1c, wc, bc)

    hr = out_full[:B, :hid].astype(jnp.float32)
    policy = out_full[:B, hid:hid + act].astype(jnp.float32)
    value = out_full[:B, hid + act].astype(jnp.float32)
    return hr, value, policy


def make_params(key, obs_dim, hid, act):
    ks = jax.random.split(key, 8)
    s = 0.1
    w1 = s * jax.random.normal(ks[0], (obs_dim, hid), jnp.float32)
    b1 = s * jax.random.normal(ks[1], (1, hid), jnp.float32)
    w2 = s * jax.random.normal(ks[2], (hid, hid), jnp.float32)
    b2 = s * jax.random.normal(ks[3], (1, hid), jnp.float32)
    wv = s * jax.random.normal(ks[4], (hid, 1), jnp.float32)
    bv = s * jax.random.normal(ks[5], (1, 1), jnp.float32)
    wp = s * jax.random.normal(ks[6], (hid, act), jnp.float32)
    bp = s * jax.random.normal(ks[7], (1, act), jnp.float32)
    return (w1, b1, w2, b2, wv, bv, wp, bp)


def reference_forward(x, params):
    """Pure-JAX reference mirroring the PyTorch per-image loop + stack/squeeze."""
    w1, b1, w2, b2, wv, bv, wp, bp = params
    h = jnp.maximum(x @ w1 + b1, 0.0)
    hr = h @ w2 + b2
    v = (hr @ wv + bv).squeeze(-1)
    p = hr @ wp + bp
    return hr, v, p


if __name__ == "__main__":
    B, OBS, HID, ACT = 256, 32, 32, 16

    key = jax.random.PRNGKey(0)
    kx, kp = jax.random.split(key)
    x = jax.random.normal(kx, (B, OBS), jnp.float32)
    params = make_params(kp, OBS, HID, ACT)

    # One-time packing outside the per-step forward (review item #2).
    packed = prepare_params(params)

    fwd = jax.jit(functools.partial(initial_model_forward, packed=packed))
    hr, v, p = fwd(x)
    jax.block_until_ready((hr, v, p))

    hr_ref, v_ref, p_ref = reference_forward(x, params)
    assert hr.shape == (B, HID) and v.shape == (B,) and p.shape == (B, ACT)
    assert jnp.allclose(hr, hr_ref, atol=1e-5)
    assert jnp.allclose(v, v_ref, atol=1e-5)
    assert jnp.allclose(p, p_ref, atol=1e-5)

    # Also exercise the multi-step grid + batch-padding path (B=100 padded to 128,
    # grid=(4,)) to make sure the tiled/padded configuration runs correctly too.
    B2 = 100
    x2 = jax.random.normal(jax.random.PRNGKey(1), (B2, OBS), jnp.float32)
    hr2, v2, p2 = initial_model_forward(x2, packed, tile_b=32)
    jax.block_until_ready((hr2, v2, p2))
    hr2_ref, v2_ref, p2_ref = reference_forward(x2, params)
    assert hr2.shape == (B2, HID) and v2.shape == (B2,) and p2.shape == (B2, ACT)
    assert jnp.allclose(hr2, hr2_ref, atol=1e-5)
    assert jnp.allclose(v2, v2_ref, atol=1e-5)
    assert jnp.allclose(p2, p2_ref, atol=1e-5)

    print("KERNEL_OK")
</pallas_src>

<mosaic_0001>
module attributes {stable_mosaic.version = 11 : i64} {
  func.func @_initial_model_kernel(%arg0: i32, %arg1: memref<256x32xf32, #tpu.memory_space<vmem>>, %arg2: memref<32x32xf32, #tpu.memory_space<vmem>>, %arg3: memref<1x32xf32, #tpu.memory_space<vmem>>, %arg4: memref<32x128xf32, #tpu.memory_space<vmem>>, %arg5: memref<1x128xf32, #tpu.memory_space<vmem>>, %arg6: memref<256x128xf32, #tpu.memory_space<vmem>>) attributes {dimension_semantics = [#tpu.dimension_semantics<parallel>], iteration_bounds = array<i64: 1>, scalar_prefetch = 0 : i64, scratch_operands = 0 : i64, tpu.core_type = #tpu.core_type<tc>, window_params = [{transform_indices = @transform_0, window_bounds = array<i64: 256, 32>}, {pipeline_mode = #tpu.pipeline_mode<synchronous>, transform_indices = @transform_1, window_bounds = array<i64: 32, 32>}, {pipeline_mode = #tpu.pipeline_mode<synchronous>, transform_indices = @transform_2, window_bounds = array<i64: 1, 32>}, {pipeline_mode = #tpu.pipeline_mode<synchronous>, transform_indices = @transform_3, window_bounds = array<i64: 32, 128>}, {pipeline_mode = #tpu.pipeline_mode<synchronous>, transform_indices = @transform_4, window_bounds = array<i64: 1, 128>}, {transform_indices = @transform_5, window_bounds = array<i64: 256, 128>}]} {
    %c0 = arith.constant 0 : index
    %c0_0 = arith.constant 0 : index
    %0 = vector.load %arg1[%c0, %c0_0] : memref<256x32xf32, #tpu.memory_space<vmem>>, vector<256x32xf32>
    %c0_1 = arith.constant 0 : index
    %c0_2 = arith.constant 0 : index
    %1 = vector.load %arg2[%c0_1, %c0_2] : memref<32x32xf32, #tpu.memory_space<vmem>>, vector<32x32xf32>
    %cst = arith.constant dense<0.000000e+00> : vector<256x32xf32>
    %2 = tpu.matmul %0, %1, %cst {dimension_numbers = #tpu.dot_dimension_numbers<[1], [0], [0], [1], [0, 0, 1, 1], [], []>} : vector<256x32xf32>, vector<32x32xf32>, vector<256x32xf32> -> vector<256x32xf32>
    %c0_3 = arith.constant 0 : index
    %c0_4 = arith.constant 0 : index
    %3 = vector.load %arg3[%c0_3, %c0_4] : memref<1x32xf32, #tpu.memory_space<vmem>>, vector<1x32xf32>
    %4 = vector.broadcast %3 : vector<1x32xf32> to vector<256x32xf32>
    %5 = arith.addf %2, %4 : vector<256x32xf32>
    %cst_5 = arith.constant 0.000000e+00 : f32
    %6 = vector.broadcast %cst_5 : f32 to vector<256x32xf32>
    %7 = arith.maximumf %5, %6 : vector<256x32xf32>
    %c0_6 = arith.constant 0 : index
    %c0_7 = arith.constant 0 : index
    %8 = vector.load %arg4[%c0_6, %c0_7] : memref<32x128xf32, #tpu.memory_space<vmem>>, vector<32x128xf32>
    %cst_8 = arith.constant dense<0.000000e+00> : vector<256x128xf32>
    %9 = tpu.matmul %7, %8, %cst_8 {dimension_numbers = #tpu.dot_dimension_numbers<[1], [0], [0], [1], [0, 0, 1, 1], [], []>} : vector<256x32xf32>, vector<32x128xf32>, vector<256x128xf32> -> vector<256x128xf32>
    %c0_9 = arith.constant 0 : index
    %c0_10 = arith.constant 0 : index
    %10 = vector.load %arg5[%c0_9, %c0_10] : memref<1x128xf32, #tpu.memory_space<vmem>>, vector<1x128xf32>
    %11 = vector.broadcast %10 : vector<1x128xf32> to vector<256x128xf32>
    %12 = arith.addf %9, %11 : vector<256x128xf32>
    %c0_11 = arith.constant 0 : index
    %c0_12 = arith.constant 0 : index
    %13 = vector.load %arg6[%c0_11, %c0_12] : memref<256x128xf32, #tpu.memory_space<vmem>>, vector<256x128xf32>
    tpu.vector_store %arg6[%c0_11, %c0_12], %12 {strides = array<i32>} : memref<256x128xf32, #tpu.memory_space<vmem>>, vector<256x128xf32>,
    return
  }
  func.func @transform_0(%arg0: i32) -> (i32, i32) {
    %c0_i32 = arith.constant 0 : i32
    %c0_i32_0 = arith.constant 0 : i32
    return %arg0, %c0_i32 : i32, i32
  }
  func.func @transform_1(%arg0: i32) -> (i32, i32) {
    %c0_i32 = arith.constant 0 : i32
    %c0_i32_0 = arith.constant 0 : i32
    %c0_i32_1 = arith.constant 0 : i32
    return %c0_i32, %c0_i32_0 : i32, i32
  }
  func.func @transform_2(%arg0: i32) -> (i32, i32) {
    %c0_i32 = arith.constant 0 : i32
    %c0_i32_0 = arith.constant 0 : i32
    %c0_i32_1 = arith.constant 0 : i32
    return %c0_i32, %c0_i32_0 : i32, i32
  }
  func.func @transform_3(%arg0: i32) -> (i32, i32) {
    %c0_i32 = arith.constant 0 : i32
    %c0_i32_0 = arith.constant 0 : i32
    %c0_i32_1 = arith.constant 0 : i32
    return %c0_i32, %c0_i32_0 : i32, i32
  }
  func.func @transform_4(%arg0: i32) -> (i32, i32) {
    %c0_i32 = arith.constant 0 : i32
    %c0_i32_0 = arith.constant 0 : i32
    %c0_i32_1 = arith.constant 0 : i32
    return %c0_i32, %c0_i32_0 : i32, i32
  }
  func.func @transform_5(%arg0: i32) -> (i32, i32) {
    %c0_i32 = arith.constant 0 : i32
    %c0_i32_0 = arith.constant 0 : i32
    return %arg0, %c0_i32 : i32, i32
  }
}

</mosaic_0001>

<llo_original>
// kernel: initial_model_forward.1
$region0: #{initial_model_forward.1}
  #allocation0 [shape = 'u32[]', space=smem, size = 0x4, offset = 0x4, fixed_abs, tag = 'smem constant byte address 0x4 - core index']
  #allocation1 [shape = 'u32[72,128]{1,0:T(1,128)}', space=vmem, size = 0x9000, scoped, tag = 'internal scratch']
  %s0 = inlined_call_operand.vmem [shape: f32[256,32], index: 0, kind: input, shape index: {}]
  %s1 = inlined_call_operand.vmem [shape: f32[32,32], index: 1, kind: input, shape index: {}]
  %s2 = inlined_call_operand.vmem [shape: f32[1,32], index: 2, kind: input, shape index: {}]
  %s3 = inlined_call_operand.vmem [shape: f32[32,128], index: 3, kind: input, shape index: {}]
  %s4 = inlined_call_operand.vmem [shape: f32[1,128], index: 4, kind: input, shape index: {}]
  %s5 = inlined_call_operand.vmem [shape: f32[256,128], index: 5, kind: output, shape index: {}]
  %s6 = sld [smem:[#allocation0]]
  $region30: #{initial_model_forward.1} parent=0
    _
  %s8 = ssub.s32 1, %s6
  %s9 = scalar_select 0, %s8, %s6
  // Predicated region
  $region2: #{initial_model_forward.1} parent=0 // pred_check
    _
  $region3: #{initial_model_forward.1} parent=0 // pred_check_branch
    %11 = sbr.rel (0) target = $region5
  $region4: #{initial_model_forward.1} parent=0 // pred_region
    _
  $region5: #{initial_model_forward.1} parent=0 // pred_fallthru
    _
  // Predicated region
  $region6: #{initial_model_forward.1} parent=0 // pred_check
    _
  $region7: #{initial_model_forward.1} parent=0 // pred_check_branch
    %13 = sbr.rel (0) target = $region9
  $region8: #{initial_model_forward.1} parent=0 // pred_region
    _
  $region9: #{initial_model_forward.1} parent=0 // pred_fallthru
    _
  // Predicated region
  $region10: #{initial_model_forward.1} parent=0 // pred_check
    _
  $region11: #{initial_model_forward.1} parent=0 // pred_check_branch
    %15 = sbr.rel (0) target = $region13
  $region12: #{initial_model_forward.1} parent=0 // pred_region
    _
  $region13: #{initial_model_forward.1} parent=0 // pred_fallthru
    _
  // Predicated region
  $region14: #{initial_model_forward.1} parent=0 // pred_check
    _
  $region15: #{initial_model_forward.1} parent=0 // pred_check_branch
    %17 = sbr.rel (0) target = $region17
  $region16: #{initial_model_forward.1} parent=0 // pred_region
    _
  $region17: #{initial_model_forward.1} parent=0 // pred_fallthru
    _
  // Predicated region
  $region18: #{initial_model_forward.1} parent=0 // pred_check
    _
  $region19: #{initial_model_forward.1} parent=0 // pred_check_branch
    %19 = sbr.rel (0) target = $region21
  $region20: #{initial_model_forward.1} parent=0 // pred_region
    _
  $region21: #{initial_model_forward.1} parent=0 // pred_fallthru
    _
  %v20 = vld [vmem:[%s0] sm:$0xff]
  %v21 = vld [vmem:[%s0 + $0x8] sm:$0xff]
  %v22 = vld [vmem:[%s0 + $0x10] sm:$0xff]
  %v23 = vld [vmem:[%s0 + $0x18] sm:$0xff]
  %v24 = vld [vmem:[%s0 + $0x20] sm:$0xff]
  %v25 = vld [vmem:[%s0 + $0x28] sm:$0xff]
  %v26 = vld [vmem:[%s0 + $0x30] sm:$0xff]
  %v27 = vld [vmem:[%s0 + $0x38] sm:$0xff]
  %v28 = vld [vmem:[%s0 + $0x40] sm:$0xff]
  %v29 = vld [vmem:[%s0 + $0x48] sm:$0xff]
  %v30 = vld [vmem:[%s0 + $0x50] sm:$0xff]
  %v31 = vld [vmem:[%s0 + $0x58] sm:$0xff]
  %v32 = vld [vmem:[%s0 + $0x60] sm:$0xff]
  %v33 = vld [vmem:[%s0 + $0x68] sm:$0xff]
  %v34 = vld [vmem:[%s0 + $0x70] sm:$0xff]
  %v35 = vld [vmem:[%s0 + $0x78] sm:$0xff]
  %v36 = vld [vmem:[%s0 + $0x80] sm:$0xff]
  %v37 = vld [vmem:[%s0 + $0x88] sm:$0xff]
  %v38 = vld [vmem:[%s0 + $0x90] sm:$0xff]
  %v39 = vld [vmem:[%s0 + $0x98] sm:$0xff]
  %v40 = vld [vmem:[%s0 + $0xa0] sm:$0xff]
  %v41 = vld [vmem:[%s0 + $0xa8] sm:$0xff]
  %v42 = vld [vmem:[%s0 + $0xb0] sm:$0xff]
  %v43 = vld [vmem:[%s0 + $0xb8] sm:$0xff]
  %v44 = vld [vmem:[%s0 + $0xc0] sm:$0xff]
  %v45 = vld [vmem:[%s0 + $0xc8] sm:$0xff]
  %v46 = vld [vmem:[%s0 + $0xd0] sm:$0xff]
  %v47 = vld [vmem:[%s0 + $0xd8] sm:$0xff]
  %v48 = vld [vmem:[%s0 + $0xe0] sm:$0xff]
  %v49 = vld [vmem:[%s0 + $0xe8] sm:$0xff]
  %v50 = vld [vmem:[%s0 + $0xf0] sm:$0xff]
  %v51 = vld [vmem:[%s0 + $0xf8] sm:$0xff]
  %v52 = vld [vmem:[%s1] sm:$0xff]
  %v53 = vld [vmem:[%s1 + $0x8] sm:$0xff]
  %v54 = vld [vmem:[%s1 + $0x10] sm:$0xff]
  %v55 = vld [vmem:[%s1 + $0x18] sm:$0xff]
  %v56 = vld [vmem:[%s2] sm:$0x1]
  %v58 = vperm.slane %v56, 0
  %vm60 = vcmask 261120
  %v62 = vsel %vm60, %v20, 0
  %v65 = vsel %vm60, %v21, 0
  %v68 = vsel %vm60, %v22, 0
  %v71 = vsel %vm60, %v23, 0
  %v74 = vsel %vm60, %v24, 0
  %v77 = vsel %vm60, %v25, 0
  %v80 = vsel %vm60, %v26, 0
  %v83 = vsel %vm60, %v27, 0
  %v86 = vsel %vm60, %v28, 0
  %v89 = vsel %vm60, %v29, 0
  %v92 = vsel %vm60, %v30, 0
  %v95 = vsel %vm60, %v31, 0
  %v98 = vsel %vm60, %v32, 0
  %v101 = vsel %vm60, %v33, 0
  %v104 = vsel %vm60, %v34, 0
  %v107 = vsel %vm60, %v35, 0
  %v110 = vsel %vm60, %v36, 0
  %v113 = vsel %vm60, %v37, 0
  %v116 = vsel %vm60, %v38, 0
  %v119 = vsel %vm60, %v39, 0
  %v122 = vsel %vm60, %v40, 0
  %v125 = vsel %vm60, %v41, 0
  %v128 = vsel %vm60, %v42, 0
  %v131 = vsel %vm60, %v43, 0
  %v134 = vsel %vm60, %v44, 0
  %v137 = vsel %vm60, %v45, 0
  %v140 = vsel %vm60, %v46, 0
  %v143 = vsel %vm60, %v47, 0
  %v146 = vsel %vm60, %v48, 0
  %v149 = vsel %vm60, %v49, 0
  %v152 = vsel %vm60, %v50, 0
  %v155 = vsel %vm60, %v51, 0
  %157 = vmatpush.msra.mxu0 0.0
  %158 = vmatpush.msra.mxu0 0.0
  %159 = vmatpush.msra.mxu0 0.0
  %160 = vmatpush.msra.mxu0 0.0
  %161 = vmatpush.msra.mxu0 0.0
  %162 = vmatpush.msra.mxu0 0.0
  %163 = vmatpush.msra.mxu0 0.0
  %164 = vmatpush.msra.mxu0 0.0
  %165 = vmatpush.msra.mxu0 0.0
  %166 = vmatpush.msra.mxu0 0.0
  %167 = vmatpush.msra.mxu0 0.0
  %168 = vmatpush.msra.mxu0 0.0
  %169 = vmatpush.msra.mxu0 %v55
  %170 = vmatpush.msra.mxu0 %v54
  %171 = vmatpush.msra.mxu0 %v53
  %172 = vmatpush.msra.mxu0 %v52
  %173 = vmatmul.f32.gmra.mxu0 %v62
  %v174 = vpop.f32.mrf.mxu0
  %v175 = vadd.f32 %v58, %v174
  %176 = vmatmul.f32.gmra.mxu0 %v65
  %v177 = vpop.f32.mrf.mxu0
  %v178 = vadd.f32 %v58, %v177
  %179 = vmatmul.f32.gmra.mxu0 %v68
  %v180 = vpop.f32.mrf.mxu0
  %v181 = vadd.f32 %v58, %v180
  %182 = vmatmul.f32.gmra.mxu0 %v71
  %v183 = vpop.f32.mrf.mxu0
  %v184 = vadd.f32 %v58, %v183
  %185 = vmatmul.f32.gmra.mxu0 %v74
  %v186 = vpop.f32.mrf.mxu0
  %v187 = vadd.f32 %v58, %v186
  %188 = vmatmul.f32.gmra.mxu0 %v77
  %v189 = vpop.f32.mrf.mxu0
  %v190 = vadd.f32 %v58, %v189
  %191 = vmatmul.f32.gmra.mxu0 %v80
  %v192 = vpop.f32.mrf.mxu0
  %v193 = vadd.f32 %v58, %v192
  %194 = vmatmul.f32.gmra.mxu0 %v83
  %v195 = vpop.f32.mrf.mxu0
  %v196 = vadd.f32 %v58, %v195
  %197 = vmatmul.f32.gmra.mxu0 %v86
  %v198 = vpop.f32.mrf.mxu0
  %v199 = vadd.f32 %v58, %v198
  %200 = vmatmul.f32.gmra.mxu0 %v89
  %v201 = vpop.f32.mrf.mxu0
  %v202 = vadd.f32 %v58, %v201
  %203 = vmatmul.f32.gmra.mxu0 %v92
  %v204 = vpop.f32.mrf.mxu0
  %v205 = vadd.f32 %v58, %v204
  %206 = vmatmul.f32.gmra.mxu0 %v95
  %v207 = vpop.f32.mrf.mxu0
  %v208 = vadd.f32 %v58, %v207
  %209 = vmatmul.f32.gmra.mxu0 %v98
  %v210 = vpop.f32.mrf.mxu0
  %v211 = vadd.f32 %v58, %v210
  %212 = vmatmul.f32.gmra.mxu0 %v101
  %v213 = vpop.f32.mrf.mxu0
  %v214 = vadd.f32 %v58, %v213
  %215 = vmatmul.f32.gmra.mxu0 %v104
  %v216 = vpop.f32.mrf.mxu0
  %v217 = vadd.f32 %v58, %v216
  %218 = vmatmul.f32.gmra.mxu0 %v107
  %v219 = vpop.f32.mrf.mxu0
  %v220 = vadd.f32 %v58, %v219
  %221 = vmatmul.f32.gmra.mxu0 %v110
  %v222 = vpop.f32.mrf.mxu0
  %v223 = vadd.f32 %v58, %v222
  %224 = vmatmul.f32.gmra.mxu0 %v113
  %v225 = vpop.f32.mrf.mxu0
  %v226 = vadd.f32 %v58, %v225
  %227 = vmatmul.f32.gmra.mxu0 %v116
  %v228 = vpop.f32.mrf.mxu0
  %v229 = vadd.f32 %v58, %v228
  %230 = vmatmul.f32.gmra.mxu0 %v119
  %v231 = vpop.f32.mrf.mxu0
  %v232 = vadd.f32 %v58, %v231
  %233 = vmatmul.f32.gmra.mxu0 %v122
  %v234 = vpop.f32.mrf.mxu0
  %v235 = vadd.f32 %v58, %v234
  %236 = vmatmul.f32.gmra.mxu0 %v125
  %v237 = vpop.f32.mrf.mxu0
  %v238 = vadd.f32 %v58, %v237
  %239 = vmatmul.f32.gmra.mxu0 %v128
  %v240 = vpop.f32.mrf.mxu0
  %v241 = vadd.f32 %v58, %v240
  %242 = vmatmul.f32.gmra.mxu0 %v131
  %v243 = vpop.f32.mrf.mxu0
  %v244 = vadd.f32 %v58, %v243
  %245 = vmatmul.f32.gmra.mxu0 %v134
  %v246 = vpop.f32.mrf.mxu0
  %v247 = vadd.f32 %v58, %v246
  %248 = vmatmul.f32.gmra.mxu0 %v137
  %v249 = vpop.f32.mrf.mxu0
  %v250 = vadd.f32 %v58, %v249
  %251 = vmatmul.f32.gmra.mxu0 %v140
  %v252 = vpop.f32.mrf.mxu0
  %v253 = vadd.f32 %v58, %v252
  %254 = vmatmul.f32.gmra.mxu0 %v143
  %v255 = vpop.f32.mrf.mxu0
  %v256 = vadd.f32 %v58, %v255
  %257 = vmatmul.f32.gmra.mxu0 %v146
  %v258 = vpop.f32.mrf.mxu0
  %v259 = vadd.f32 %v58, %v258
  %260 = vmatmul.f32.gmra.mxu0 %v149
  %v261 = vpop.f32.mrf.mxu0
  %v262 = vadd.f32 %v58, %v261
  %263 = vmatmul.f32.gmra.mxu0 %v152
  %v264 = vpop.f32.mrf.mxu0
  %v265 = vadd.f32 %v58, %v264
  %266 = vmatmul.f32.gmra.mxu0 %v155
  %v267 = vpop.f32.mrf.mxu0
  %v268 = vadd.f32 %v58, %v267
  %269 = vdwg.mxu0
  %v270 = vmax.f32 %v175, 0.0
  %v271 = vmax.f32 %v178, 0.0
  %v272 = vmax.f32 %v181, 0.0
  %v273 = vmax.f32 %v184, 0.0
  %v274 = vmax.f32 %v187, 0.0
  %v275 = vmax.f32 %v190, 0.0
  %v276 = vmax.f32 %v193, 0.0
  %v277 = vmax.f32 %v196, 0.0
  %v278 = vmax.f32 %v199, 0.0
  %v279 = vmax.f32 %v202, 0.0
  %v280 = vmax.f32 %v205, 0.0
  %v281 = vmax.f32 %v208, 0.0
  %v282 = vmax.f32 %v211, 0.0
  %v283 = vmax.f32 %v214, 0.0
  %v284 = vmax.f32 %v217, 0.0
  %v285 = vmax.f32 %v220, 0.0
  %v286 = vmax.f32 %v223, 0.0
  %v287 = vmax.f32 %v226, 0.0
  %v288 = vmax.f32 %v229, 0.0
  %v289 = vmax.f32 %v232, 0.0
  %v290 = vmax.f32 %v235, 0.0
  %v291 = vmax.f32 %v238, 0.0
  %v292 = vmax.f32 %v241, 0.0
  %v293 = vmax.f32 %v244, 0.0
  %v294 = vmax.f32 %v247, 0.0
  %v295 = vmax.f32 %v250, 0.0
  %v296 = vmax.f32 %v253, 0.0
  %v297 = vmax.f32 %v256, 0.0
  %v298 = vmax.f32 %v259, 0.0
  %v299 = vmax.f32 %v262, 0.0
  %v300 = vmax.f32 %v265, 0.0
  %v301 = vmax.f32 %v268, 0.0
  %v302 = vld [vmem:[%s3] sm:$0xff]
  %v303 = vld [vmem:[%s3 + $0x8] sm:$0xff]
  %v304 = vld [vmem:[%s3 + $0x10] sm:$0xff]
  %v305 = vld [vmem:[%s3 + $0x18] sm:$0xff]
  %v306 = vld [vmem:[%s4] sm:$0x1]
  %v308 = vperm.slane %v306, 0
  %v311 = vsel %vm60, %v270, 0
  %v314 = vsel %vm60, %v271, 0
  %v317 = vsel %vm60, %v272, 0
  %v320 = vsel %vm60, %v273, 0
  %v323 = vsel %vm60, %v274, 0
  %v326 = vsel %vm60, %v275, 0
  %v329 = vsel %vm60, %v276, 0
  %v332 = vsel %vm60, %v277, 0
  %v335 = vsel %vm60, %v278, 0
  %v338 = vsel %vm60, %v279, 0
  %v341 = vsel %vm60, %v280, 0
  %v344 = vsel %vm60, %v281, 0
  %v347 = vsel %vm60, %v282, 0
  %v350 = vsel %vm60, %v283, 0
  %v353 = vsel %vm60, %v284, 0
  %v356 = vsel %vm60, %v285, 0
  %v359 = vsel %vm60, %v286, 0
  %v362 = vsel %vm60, %v287, 0
  %v365 = vsel %vm60, %v288, 0
  %v368 = vsel %vm60, %v289, 0
  %v371 = vsel %vm60, %v290, 0
  %v374 = vsel %vm60, %v291, 0
  %v377 = vsel %vm60, %v292, 0
  %v380 = vsel %vm60, %v293, 0
  %v383 = vsel %vm60, %v294, 0
  %v386 = vsel %vm60, %v295, 0
  %v389 = vsel %vm60, %v296, 0
  %v392 = vsel %vm60, %v297, 0
  %v395 = vsel %vm60, %v298, 0
  %v398 = vsel %vm60, %v299, 0
  %v401 = vsel %vm60, %v300, 0
  %v404 = vsel %vm60, %v301, 0
  %406 = vmatpush.msra.mxu0 0.0
  %407 = vmatpush.msra.mxu0 0.0
  %408 = vmatpush.msra.mxu0 0.0
  %409 = vmatpush.msra.mxu0 0.0
  %410 = vmatpush.msra.mxu0 0.0
  %411 = vmatpush.msra.mxu0 0.0
  %412 = vmatpush.msra.mxu0 0.0
  %413 = vmatpush.msra.mxu0 0.0
  %414 = vmatpush.msra.mxu0 0.0
  %415 = vmatpush.msra.mxu0 0.0
  %416 = vmatpush.msra.mxu0 0.0
  %417 = vmatpush.msra.mxu0 0.0
  %418 = vmatpush.msra.mxu0 %v305
  %419 = vmatpush.msra.mxu0 %v304
  %420 = vmatpush.msra.mxu0 %v303
  %421 = vmatpush.msra.mxu0 %v302
  %422 = vmatmul.f32.gmra.mxu0 %v311
  %v423 = vpop.f32.mrf.mxu0
  %v424 = vadd.f32 %v308, %v423
  %425 = vmatmul.f32.gmra.mxu0 %v314
  %v426 = vpop.f32.mrf.mxu0
  %v427 = vadd.f32 %v308, %v426
  %428 = vmatmul.f32.gmra.mxu0 %v317
  %v429 = vpop.f32.mrf.mxu0
  %v430 = vadd.f32 %v308, %v429
  %431 = vmatmul.f32.gmra.mxu0 %v320
  %v432 = vpop.f32.mrf.mxu0
  %v433 = vadd.f32 %v308, %v432
  %434 = vmatmul.f32.gmra.mxu0 %v323
  %v435 = vpop.f32.mrf.mxu0
  %v436 = vadd.f32 %v308, %v435
  %437 = vmatmul.f32.gmra.mxu0 %v326
  %v438 = vpop.f32.mrf.mxu0
  %v439 = vadd.f32 %v308, %v438
  %440 = vmatmul.f32.gmra.mxu0 %v329
  %v441 = vpop.f32.mrf.mxu0
  %v442 = vadd.f32 %v308, %v441
  %443 = vmatmul.f32.gmra.mxu0 %v332
  %v444 = vpop.f32.mrf.mxu0
  %v445 = vadd.f32 %v308, %v444
  %446 = vmatmul.f32.gmra.mxu0 %v335
  %v447 = vpop.f32.mrf.mxu0
  %v448 = vadd.f32 %v308, %v447
  %449 = vmatmul.f32.gmra.mxu0 %v338
  %v450 = vpop.f32.mrf.mxu0
  %v451 = vadd.f32 %v308, %v450
  %452 = vmatmul.f32.gmra.mxu0 %v341
  %v453 = vpop.f32.mrf.mxu0
  %v454 = vadd.f32 %v308, %v453
  %455 = vmatmul.f32.gmra.mxu0 %v344
  %v456 = vpop.f32.mrf.mxu0
  %v457 = vadd.f32 %v308, %v456
  %458 = vmatmul.f32.gmra.mxu0 %v347
  %v459 = vpop.f32.mrf.mxu0
  %v460 = vadd.f32 %v308, %v459
  %461 = vmatmul.f32.gmra.mxu0 %v350
  %v462 = vpop.f32.mrf.mxu0
  %v463 = vadd.f32 %v308, %v462
  %464 = vmatmul.f32.gmra.mxu0 %v353
  %v465 = vpop.f32.mrf.mxu0
  %v466 = vadd.f32 %v308, %v465
  %467 = vmatmul.f32.gmra.mxu0 %v356
  %v468 = vpop.f32.mrf.mxu0
  %v469 = vadd.f32 %v308, %v468
  %470 = vmatmul.f32.gmra.mxu0 %v359
  %v471 = vpop.f32.mrf.mxu0
  %v472 = vadd.f32 %v308, %v471
  %473 = vmatmul.f32.gmra.mxu0 %v362
  %v474 = vpop.f32.mrf.mxu0
  %v475 = vadd.f32 %v308, %v474
  %476 = vmatmul.f32.gmra.mxu0 %v365
  %v477 = vpop.f32.mrf.mxu0
  %v478 = vadd.f32 %v308, %v477
  %479 = vmatmul.f32.gmra.mxu0 %v368
  %v480 = vpop.f32.mrf.mxu0
  %v481 = vadd.f32 %v308, %v480
  %482 = vmatmul.f32.gmra.mxu0 %v371
  %v483 = vpop.f32.mrf.mxu0
  %v484 = vadd.f32 %v308, %v483
  %485 = vmatmul.f32.gmra.mxu0 %v374
  %v486 = vpop.f32.mrf.mxu0
  %v487 = vadd.f32 %v308, %v486
  %488 = vmatmul.f32.gmra.mxu0 %v377
  %v489 = vpop.f32.mrf.mxu0
  %v490 = vadd.f32 %v308, %v489
  %491 = vmatmul.f32.gmra.mxu0 %v380
  %v492 = vpop.f32.mrf.mxu0
  %v493 = vadd.f32 %v308, %v492
  %494 = vmatmul.f32.gmra.mxu0 %v383
  %v495 = vpop.f32.mrf.mxu0
  %v496 = vadd.f32 %v308, %v495
  %497 = vmatmul.f32.gmra.mxu0 %v386
  %v498 = vpop.f32.mrf.mxu0
  %v499 = vadd.f32 %v308, %v498
  %500 = vmatmul.f32.gmra.mxu0 %v389
  %v501 = vpop.f32.mrf.mxu0
  %v502 = vadd.f32 %v308, %v501
  %503 = vmatmul.f32.gmra.mxu0 %v392
  %v504 = vpop.f32.mrf.mxu0
  %v505 = vadd.f32 %v308, %v504
  %506 = vmatmul.f32.gmra.mxu0 %v395
  %v507 = vpop.f32.mrf.mxu0
  %v508 = vadd.f32 %v308, %v507
  %509 = vmatmul.f32.gmra.mxu0 %v398
  %v510 = vpop.f32.mrf.mxu0
  %v511 = vadd.f32 %v308, %v510
  %512 = vmatmul.f32.gmra.mxu0 %v401
  %v513 = vpop.f32.mrf.mxu0
  %v514 = vadd.f32 %v308, %v513
  %515 = vmatmul.f32.gmra.mxu0 %v404
  %v516 = vpop.f32.mrf.mxu0
  %v517 = vadd.f32 %v308, %v516
  %518 = vdwg.mxu0
  %519 = vst [vmem:[%s5] sm:$0xff] %v424
  %520 = vst [vmem:[%s5 + $0x8] sm:$0xff] %v427
  %521 = vst [vmem:[%s5 + $0x10] sm:$0xff] %v430
  %522 = vst [vmem:[%s5 + $0x18] sm:$0xff] %v433
  %523 = vst [vmem:[%s5 + $0x20] sm:$0xff] %v436
  %524 = vst [vmem:[%s5 + $0x28] sm:$0xff] %v439
  %525 = vst [vmem:[%s5 + $0x30] sm:$0xff] %v442
  %526 = vst [vmem:[%s5 + $0x38] sm:$0xff] %v445
  %527 = vst [vmem:[%s5 + $0x40] sm:$0xff] %v448
  %528 = vst [vmem:[%s5 + $0x48] sm:$0xff] %v451
  %529 = vst [vmem:[%s5 + $0x50] sm:$0xff] %v454
  %530 = vst [vmem:[%s5 + $0x58] sm:$0xff] %v457
  %531 = vst [vmem:[%s5 + $0x60] sm:$0xff] %v460
  %532 = vst [vmem:[%s5 + $0x68] sm:$0xff] %v463
  %533 = vst [vmem:[%s5 + $0x70] sm:$0xff] %v466
  %534 = vst [vmem:[%s5 + $0x78] sm:$0xff] %v469
  %535 = vst [vmem:[%s5 + $0x80] sm:$0xff] %v472
  %536 = vst [vmem:[%s5 + $0x88] sm:$0xff] %v475
  %537 = vst [vmem:[%s5 + $0x90] sm:$0xff] %v478
  %538 = vst [vmem:[%s5 + $0x98] sm:$0xff] %v481
  %539 = vst [vmem:[%s5 + $0xa0] sm:$0xff] %v484
  %540 = vst [vmem:[%s5 + $0xa8] sm:$0xff] %v487
  %541 = vst [vmem:[%s5 + $0xb0] sm:$0xff] %v490
  %542 = vst [vmem:[%s5 + $0xb8] sm:$0xff] %v493
  %543 = vst [vmem:[%s5 + $0xc0] sm:$0xff] %v496
  %544 = vst [vmem:[%s5 + $0xc8] sm:$0xff] %v499
  %545 = vst [vmem:[%s5 + $0xd0] sm:$0xff] %v502
  %546 = vst [vmem:[%s5 + $0xd8] sm:$0xff] %v505
  %547 = vst [vmem:[%s5 + $0xe0] sm:$0xff] %v508
  %548 = vst [vmem:[%s5 + $0xe8] sm:$0xff] %v511
  %549 = vst [vmem:[%s5 + $0xf0] sm:$0xff] %v514
  %550 = vst [vmem:[%s5 + $0xf8] sm:$0xff] %v517
  // Predicated region
  $region22: #{initial_model_forward.1} parent=0 // pred_check
    _
  $region23: #{initial_model_forward.1} parent=0 // pred_check_branch
    %552 = sbr.rel (0) target = $region25
  $region24: #{initial_model_forward.1} parent=0 // pred_region
    _
  $region25: #{initial_model_forward.1} parent=0 // pred_fallthru
    _
  // Predicated region
  $region26: #{initial_model_forward.1} parent=0 // pred_check
    _
  $region27: #{initial_model_forward.1} parent=0 // pred_check_branch
    %554 = sbr.rel (0) target = $region29
  $region28: #{initial_model_forward.1} parent=0 // pred_region
    _
  $region29: #{initial_model_forward.1} parent=0 // pred_fallthru
    _

</llo_original>
